<compile_context>
chip_gen: v5e
topology: v5e:2x2
jax: 0.10.0
libtpu: 0.0.40
codegen_flags: <defaults>
</compile_context>

<pallas_src>
import functools
import math

import jax
import jax.numpy as jnp
from jax.experimental import pallas as pl
from jax.experimental.pallas import tpu as pltpu


# ----------------------------------------------------------------------------
# Parameter / buffer construction (mirrors SynthesisBank.__init__)
# ----------------------------------------------------------------------------
def make_synth_filters(nyquist, n_osc, n_samples, key):
    # freqs = linspace(20/nyquist, nyquist*0.99, n_osc) ** 2
    freqs = jnp.linspace(20.0 / nyquist, nyquist * 0.99, n_osc) ** 2
    freqs = jnp.tile(freqs[:, None], (1, n_samples)) * math.pi          # (n_osc, n_samples)
    osc = jnp.sin(jnp.cumsum(freqs, axis=-1))[None, :, :]               # (1, n_osc, n_samples)

    # noise ~ U(-1, 1), deterministic via PRNGKey
    noise = jax.random.uniform(key, (1, 1, n_samples), minval=-1.0, maxval=1.0)
    noise_spec = jnp.fft.rfft(noise, axis=-1, norm="ortho")

    # torch.hamming_window(128): 0.54 - 0.46*cos(2*pi*n/128)
    n = jnp.arange(128, dtype=jnp.float32)
    hamming = 0.54 - 0.46 * jnp.cos(2.0 * math.pi * n / 128.0)

    osc_filt = osc[..., :128] * hamming[None, None, :]
    osc_filt = jnp.pad(osc_filt, ((0, 0), (0, 0), (0, n_samples - 128)))
    osc_spec = jnp.fft.rfft(osc_filt, axis=-1, norm="ortho")

    conv = noise_spec * osc_spec
    noise_bank = jnp.fft.irfft(conv, n=n_samples, axis=-1, norm="ortho")  # (1, n_osc, n_samples)

    synth_filters = jnp.concatenate([osc, noise_bank], axis=1)            # (1, 2*n_osc, n_samples)
    return synth_filters.astype(jnp.float32)


# ----------------------------------------------------------------------------
# Linear interpolation matrix (host-side, reference only).
# F.interpolate(mode='linear', align_corners=False) semantics.
# ----------------------------------------------------------------------------
def make_interp_matrix(t_in, t_out):
    scale = t_in / t_out
    dst = jnp.arange(t_out, dtype=jnp.float32)
    src = (dst + 0.5) * scale - 0.5
    src = jnp.where(src < 0.0, 0.0, src)                # PyTorch clamps negative coords to 0
    idx0 = jnp.clip(jnp.floor(src).astype(jnp.int32), 0, t_in - 1)
    idx1 = jnp.where(idx0 < t_in - 1, idx0 + 1, idx0)
    lam1 = src - idx0.astype(jnp.float32)
    lam0 = 1.0 - lam1
    cols = jnp.arange(t_out)
    w = jnp.zeros((t_in, t_out), jnp.float32)
    w = w.at[idx0, cols].add(lam0)
    w = w.at[idx1, cols].add(lam1)
    return w                                            # (t_in, t_out)


# ----------------------------------------------------------------------------
# Pallas kernel: one grid step = one lane-dense time tile of width TN.
#   W_tile built in-kernel (VPU)          : (T_in, TN), 2 taps per column
#   y       = x2d @ W_tile   (MXU)        : (B*Cp, TN)
#   out     = sum_c y[b, c] * filt[c]     : (B, TN), single dense store
# ----------------------------------------------------------------------------
def synth_bank_kernel(x_ref, f_ref, o_ref, *, batch, c_pad, t_in, tile_n, scale):
    # x_ref : (batch * c_pad, T_in) f32  -- resident across the whole grid
    # f_ref : (c_pad, TN)                -- streamed synth-filter tile (bf16/f32)
    # o_ref : (batch, TN) f32            -- lane-dense output tile
    j = pl.program_id(0)

    # ---- Build the (T_in, TN) interpolation tile in-kernel (pure VPU). ----
    # src = (dst + 0.5) * (T_in / N) - 0.5, clamped to >= 0 (align_corners=False)
    col = jax.lax.broadcasted_iota(jnp.int32, (1, tile_n), 1) + j * tile_n
    src = jnp.maximum(col.astype(jnp.float32) * scale + (0.5 * scale - 0.5), 0.0)
    idx0f = jnp.clip(jnp.floor(src), 0.0, float(t_in - 1))
    lam1 = src - idx0f
    lam0 = 1.0 - lam1
    idx0 = idx0f.astype(jnp.int32)
    idx1 = jnp.minimum(idx0 + 1, t_in - 1)              # right edge folds onto idx0 (w sums to 1)
    rows = jax.lax.broadcasted_iota(jnp.int32, (t_in, tile_n), 0)
    w = jnp.where(rows == idx0, lam0, 0.0) + jnp.where(rows == idx1, lam1, 0.0)

    # ---- Interpolation: one MXU matmul with batch folded into M. ----
    y = jnp.dot(x_ref[...], w, preferred_element_type=jnp.float32)      # (B*Cp, TN)

    # ---- Filter multiply + channel reduction, single dense store. ----
    f = f_ref[...].astype(jnp.float32)                                   # cast after load (v5e-safe)
    y = y.reshape(batch, c_pad, tile_n)                                  # Cp % 8 == 0 -> tile-aligned
    o_ref[...] = jnp.sum(y * f[None, :, :], axis=1)                      # (B, TN), unmasked lanes


# ----------------------------------------------------------------------------
# Wrapper: padding, budget-driven tiling, pallas_call
# ----------------------------------------------------------------------------
def _round_up(x, m):
    return (x + m - 1) // m * m


def _vmem_capacity_bytes():
    try:
        return int(pltpu.get_tpu_info().vmem_capacity_bytes)
    except Exception:
        return 64 * 1024 * 1024          # conservative fallback (v7x per-TC VMEM)


def _choose_tile_n(n_pad, tn_cap):
    """Largest multiple of 128 dividing n_pad, <= tn_cap, preferring grid >= 2."""
    def best_leq(limit):
        best = 128
        for tn in range(128, min(n_pad, limit) + 1, 128):
            if n_pad % tn == 0:
                best = tn
        return best

    tn = best_leq(tn_cap)
    if tn == n_pad and n_pad >= 256:     # keep >= 2 grid steps (v7x TC sharding)
        tn = best_leq(min(tn_cap, n_pad // 2))
    return tn


def synthesis_bank_forward(x, synth_filters, n_samples, *,
                           filter_dtype=jnp.bfloat16, max_tile_n=32768):
    """x: (B, total_bands, T_in) or (B, total_bands*T_in). Returns (B, 1, n_samples) f32."""
    total_bands = synth_filters.shape[1]
    x = x.reshape(x.shape[0], total_bands, -1).astype(jnp.float32)
    B, C, T_in = x.shape
    N = int(n_samples)

    # Pad channels up to a multiple of 8 (sublane tile); zero rows contribute 0 to the sum.
    Cp = _round_up(C, 8)
    # Pad time up to a multiple of 128 (lane tile); padded output columns are sliced off.
    n_pad = _round_up(N, 128)

    filt = synth_filters[0].astype(jnp.float32)                    # (C, N)
    filt = jnp.pad(filt, ((0, Cp - C), (0, n_pad - N))).astype(filter_dtype)
    if Cp != C:
        x = jnp.pad(x, ((0, 0), (0, Cp - C), (0, 0)))
    x2d = x.reshape(B * Cp, T_in)                                  # fold batch into MXU M

    # --- VMEM-budget-driven tile width (per TPU generation). ---
    vmem_cap = _vmem_capacity_bytes()
    budget = int(vmem_cap * 0.55)
    f_item = jnp.dtype(filter_dtype).itemsize
    fixed = 2 * (B * Cp * T_in * 4)        # resident x2d, counted double-buffered
    per_col = (2 * Cp * f_item             # streamed filter tile (double-buffered)
               + Cp * 4                    # f32 cast of the filter tile
               + 2 * B * 4                 # output tile (double-buffered)
               + T_in * 4                  # in-kernel interpolation tile
               + B * Cp * 4)               # (B*Cp, TN) matmul intermediate
    tn_cap = (budget - fixed) // per_col if budget > fixed else 128
    tn_cap = max(128, (min(max_tile_n, tn_cap) // 128) * 128)

    TN = _choose_tile_n(n_pad, tn_cap)
    grid = (n_pad // TN,)

    kernel = functools.partial(
        synth_bank_kernel, batch=B, c_pad=Cp, t_in=T_in, tile_n=TN,
        scale=float(T_in) / float(N))

    out = pl.pallas_call(
        kernel,
        out_shape=jax.ShapeDtypeStruct((B, n_pad), jnp.float32),
        grid_spec=pltpu.PrefetchScalarGridSpec(
            num_scalar_prefetch=0,
            grid=grid,
            in_specs=[
                # TODO(synk): for very large B*Cp*T_in, single-buffer this resident
                # operand or move batch onto a second grid axis to cap the
                # (B*Cp, TN) intermediate; small/medium B is covered by the budget.
                pl.BlockSpec((B * Cp, T_in), lambda j: (0, 0)),    # resident x2d
                pl.BlockSpec((Cp, TN), lambda j: (0, j)),          # streamed filter tile
            ],
            out_specs=pl.BlockSpec((B, TN), lambda j: (0, j)),
        ),
        compiler_params=pltpu.CompilerParams(
            dimension_semantics=("parallel",),                     # shards across TCs on v7x
            vmem_limit_bytes=int(vmem_cap * 0.85),
        ),
    )(x2d, filt)

    return out[:, :N].reshape(B, 1, N)


# ----------------------------------------------------------------------------
# Pure-JAX reference (sanity check against the kernel)
# ----------------------------------------------------------------------------
def synthesis_bank_ref(x, synth_filters, n_samples):
    total_bands = synth_filters.shape[1]
    x = x.reshape(x.shape[0], total_bands, -1).astype(jnp.float32)
    w = make_interp_matrix(x.shape[-1], n_samples)
    y = jnp.einsum("bct,tn->bcn", x, w)
    y = y * synth_filters                           # broadcast over batch
    return jnp.sum(y, axis=1, keepdims=True)        # (B, 1, n_samples)


if __name__ == "__main__":
    # Small, module-consistent shapes.
    nyquist = 11025.0        # samplerate.nyquist
    n_osc = 4
    n_samples = 256          # must be >= 128 (hamming window length in __init__)
    total_bands = 2 * n_osc  # 8
    B, T_in = 2, 8

    key = jax.random.PRNGKey(0)
    k_noise, k_x = jax.random.split(key)

    synth_filters = make_synth_filters(nyquist, n_osc, n_samples, k_noise)  # (1, 8, 256)
    x = jax.random.normal(k_x, (B, total_bands, T_in), dtype=jnp.float32)   # (2, 8, 8)

    ref = jax.block_until_ready(synthesis_bank_ref(x, synth_filters, n_samples))

    # Exact-precision path (f32 filter stream) -> tight tolerance.
    out_f32 = jax.block_until_ready(
        synthesis_bank_forward(x, synth_filters, n_samples, filter_dtype=jnp.float32))
    assert out_f32.shape == (B, 1, n_samples), out_f32.shape
    assert jnp.allclose(out_f32, ref, atol=1e-4, rtol=1e-3), \
        float(jnp.max(jnp.abs(out_f32 - ref)))

    # Default production path (bf16 filter stream, f32 accumulate) -> relaxed tolerance.
    out_bf16 = jax.block_until_ready(
        synthesis_bank_forward(x, synth_filters, n_samples))
    assert out_bf16.shape == (B, 1, n_samples), out_bf16.shape
    assert jnp.allclose(out_bf16, ref, atol=1e-1, rtol=5e-2), \
        float(jnp.max(jnp.abs(out_bf16 - ref)))

    print("KERNEL_OK")
</pallas_src>

<mosaic_0001>
module attributes {stable_mosaic.version = 11 : i64} {
  func.func @synth_bank_kernel(%arg0: i32, %arg1: memref<16x8xf32, #tpu.memory_space<vmem>>, %arg2: memref<8x128xf32, #tpu.memory_space<vmem>>, %arg3: memref<2x128xf32, #tpu.memory_space<vmem>>) attributes {dimension_semantics = [#tpu.dimension_semantics<parallel>], iteration_bounds = array<i64: 2>, scalar_prefetch = 0 : i64, scratch_operands = 0 : i64, tpu.core_type = #tpu.core_type<tc>, window_params = [{pipeline_mode = #tpu.pipeline_mode<synchronous>, transform_indices = @transform_0, window_bounds = array<i64: 16, 8>}, {transform_indices = @transform_1, window_bounds = array<i64: 8, 128>}, {transform_indices = @transform_2, window_bounds = array<i64: 2, 128>}]} {
    %0 = tpu.iota {dimensions = array<i32: 1>} : vector<1x128xi32>
    %c128_i32 = arith.constant 128 : i32
    %1 = arith.muli %arg0, %c128_i32 : i32
    %2 = vector.broadcast %1 : i32 to vector<1x128xi32>
    %3 = arith.addi %0, %2 : vector<1x128xi32>
    %4 = arith.sitofp %3 : vector<1x128xi32> to vector<1x128xf32>
    %cst = arith.constant 3.125000e-02 : f32
    %5 = vector.broadcast %cst : f32 to vector<1x128xf32>
    %6 = arith.mulf %4, %5 : vector<1x128xf32>
    %cst_0 = arith.constant -4.843750e-01 : f32
    %7 = vector.broadcast %cst_0 : f32 to vector<1x128xf32>
    %8 = arith.addf %6, %7 : vector<1x128xf32>
    %cst_1 = arith.constant 0.000000e+00 : f32
    %9 = vector.broadcast %cst_1 : f32 to vector<1x128xf32>
    %10 = arith.maximumf %8, %9 : vector<1x128xf32>
    %11 = math.floor %10 : vector<1x128xf32>
    %cst_2 = arith.constant 0.000000e+00 : f32
    %cst_3 = arith.constant 7.000000e+00 : f32
    %12 = vector.broadcast %cst_2 : f32 to vector<1x128xf32>
    %13 = arith.maximumf %12, %11 : vector<1x128xf32>
    %14 = vector.broadcast %cst_3 : f32 to vector<1x128xf32>
    %15 = arith.minimumf %14, %13 : vector<1x128xf32>
    %16 = arith.subf %10, %15 : vector<1x128xf32>
    %cst_4 = arith.constant 1.000000e+00 : f32
    %17 = vector.broadcast %cst_4 : f32 to vector<1x128xf32>
    %18 = arith.subf %17, %16 : vector<1x128xf32>
    %19 = arith.fptosi %15 : vector<1x128xf32> to vector<1x128xi32>
    %c1_i32 = arith.constant 1 : i32
    %20 = vector.broadcast %c1_i32 : i32 to vector<1x128xi32>
    %21 = arith.addi %19, %20 : vector<1x128xi32>
    %c7_i32 = arith.constant 7 : i32
    %22 = vector.broadcast %c7_i32 : i32 to vector<1x128xi32>
    %23 = arith.minsi %21, %22 : vector<1x128xi32>
    %24 = tpu.iota {dimensions = array<i32: 0>} : vector<8x128xi32>
    %25 = vector.broadcast %19 : vector<1x128xi32> to vector<8x128xi32>
    %26 = arith.cmpi eq, %24, %25 : vector<8x128xi32>
    %cst_5 = arith.constant 0.000000e+00 : f32
    %27 = vector.shape_cast %18 : vector<1x128xf32> to vector<1x128xf32>
    %28 = vector.broadcast %27 : vector<1x128xf32> to vector<8x128xf32>
    %29 = vector.broadcast %cst_5 : f32 to vector<8x128xf32>
    %30 = arith.select %26, %28, %29 : vector<8x128xi1>, vector<8x128xf32>
    %31 = vector.broadcast %23 : vector<1x128xi32> to vector<8x128xi32>
    %32 = arith.cmpi eq, %24, %31 : vector<8x128xi32>
    %cst_6 = arith.constant 0.000000e+00 : f32
    %33 = vector.shape_cast %16 : vector<1x128xf32> to vector<1x128xf32>
    %34 = vector.broadcast %33 : vector<1x128xf32> to vector<8x128xf32>
    %35 = vector.broadcast %cst_6 : f32 to vector<8x128xf32>
    %36 = arith.select %32, %34, %35 : vector<8x128xi1>, vector<8x128xf32>
    %37 = arith.addf %30, %36 : vector<8x128xf32>
    %c0 = arith.constant 0 : index
    %c0_7 = arith.constant 0 : index
    %38 = vector.load %arg1[%c0, %c0_7] : memref<16x8xf32, #tpu.memory_space<vmem>>, vector<16x8xf32>
    %cst_8 = arith.constant dense<0.000000e+00> : vector<16x128xf32>
    %39 = tpu.matmul %38, %37, %cst_8 {dimension_numbers = #tpu.dot_dimension_numbers<[1], [0], [0], [1], [0, 0, 1, 1], [], []>} : vector<16x8xf32>, vector<8x128xf32>, vector<16x128xf32> -> vector<16x128xf32>
    %c0_9 = arith.constant 0 : index
    %c0_10 = arith.constant 0 : index
    %40 = vector.load %arg2[%c0_9, %c0_10] : memref<8x128xf32, #tpu.memory_space<vmem>>, vector<8x128xf32>
    %41 = vector.shape_cast %39 : vector<16x128xf32> to vector<2x8x128xf32>
    %42 = vector.shape_cast %40 : vector<8x128xf32> to vector<1x8x128xf32>
    %43 = vector.broadcast %42 : vector<1x8x128xf32> to vector<2x8x128xf32>
    %44 = arith.mulf %41, %43 : vector<2x8x128xf32>
    %cst_11 = arith.constant dense<0.000000e+00> : vector<2x128xf32>
    %45 = vector.multi_reduction <add>, %44, %cst_11 [1] : vector<2x8x128xf32> to vector<2x128xf32>
    %c0_12 = arith.constant 0 : index
    %c0_13 = arith.constant 0 : index
    %46 = vector.load %arg3[%c0_12, %c0_13] : memref<2x128xf32, #tpu.memory_space<vmem>>, vector<2x128xf32>
    tpu.vector_store %arg3[%c0_12, %c0_13], %45 {strides = array<i32>} : memref<2x128xf32, #tpu.memory_space<vmem>>, vector<2x128xf32>,
    return
  }
  func.func @transform_0(%arg0: i32) -> (i32, i32) {
    %c0_i32 = arith.constant 0 : i32
    %c0_i32_0 = arith.constant 0 : i32
    %c0_i32_1 = arith.constant 0 : i32
    return %c0_i32, %c0_i32_0 : i32, i32
  }
  func.func @transform_1(%arg0: i32) -> (i32, i32) {
    %c0_i32 = arith.constant 0 : i32
    %c0_i32_0 = arith.constant 0 : i32
    return %c0_i32, %arg0 : i32, i32
  }
  func.func @transform_2(%arg0: i32) -> (i32, i32) {
    %c0_i32 = arith.constant 0 : i32
    %c0_i32_0 = arith.constant 0 : i32
    return %c0_i32, %arg0 : i32, i32
  }
}

</mosaic_0001>

<llo_original>
// kernel: tpu_custom_call.1
$region0: #{tpu_custom_call.1}
  #allocation0 [shape = 'u32[]', space=smem, size = 0x4, offset = 0x4, fixed_abs, tag = 'smem constant byte address 0x4 - core index']
  #allocation1 [shape = 'u32[72,128]{1,0:T(1,128)}', space=vmem, size = 0x9000, scoped, tag = 'internal scratch']
  %s0 = inlined_call_operand.vmem [shape: f32[16,8], index: 0, kind: input, shape index: {}]
  %s1 = inlined_call_operand.vmem [shape: f32[8,256], index: 1, kind: input, shape index: {}]
  %s2 = inlined_call_operand.hbm [shape: f32[2,256], index: 2, kind: output, shape index: {}]
  %s3 = sld [smem:[#allocation0]]
  $region41: #{tpu_custom_call.1} parent=0
    _
  %s5 = ssub.s32 1, %s3
  %s6 = scalar_select 0, %s5, %s3
  $region1: #{tpu_custom_call.1} parent=0
    #allocation2 [shape = 'u8[2048]{0}', space=vmem, size = 0x800, scoped, tag = 'output window, operand 0']
    #allocation3 [shape = 's32[2]{0}', space=sflag, size = 0x8, scoped, tag = 'scoped memory for tpu_custom_call.1']
    %7 = vsyncpa [#allocation3], 0
    %s8 = scalar_lea.sflag [#allocation3], 1
    %9 = vsyncpa %s8, 0
    loop: start=0, step=1, limit=4
    $region2: #{tpu_custom_call.1} parent=1 // loop_pre_header
      _
    $region3: #{tpu_custom_call.1} parent=1 // loop_header
      %s11 = sphi 0, %s15
      %p12 = scmp.ge.s32.totalorder %s11, 4
      %s19 = sphi 0, %s19
      %s21 = sphi 0, %s19
      %s22 = sphi 0, %s21
      %s36 = sphi 0, %s22
      %s42 = sphi 0, %s44
      %s45 = sphi 0, %s42
      %s46 = sphi 0, %s45
      %s62 = sphi 0, %s46
      %s68 = sphi 0, %s70
      %s71 = sphi 0, %s68
      %s72 = sphi 0, %s71
      %s88 = sphi 0, %s72
    $region4: #{tpu_custom_call.1} parent=1 // loop_header_branch
      %14 = sbr.rel (%p12) target = $region8
    $region5: #{tpu_custom_call.1} parent=1 // loop_body
      %s16 = ssub.s32 %s11, 1
      %s17 = ssub.s32 %s11, 2
      %s18 = sadd.s32 %s11, 1
      %s20 = sadd.s32 %s19, 1
      %p23 = scmp.eq.s32.totalorder %s11, 1
      %p24 = scmp.ne.s32.totalorder %s19, %s21
      %p25 = scmp.eq.s32.totalorder %s11, 0
      %p26 = por %p24, %p25
      %p27 = scmp.ne.s32.totalorder %s19, %s21
      %p28 = scmp.eq.s32.totalorder %s16, 1
      %p29 = por %p27, %p28
      %p30 = scmp.ne.s32.totalorder %s21, %s22
      %p31 = scmp.eq.s32.totalorder %s16, 0
      %p32 = por %p30, %p31
      %p33 = scmp.ne.s32.totalorder %s21, %s22
      %p34 = scmp.eq.s32.totalorder %s17, 1
      %p35 = por %p33, %p34
      %p37 = scmp.ne.s32.totalorder %s22, %s36
      %p38 = scmp.eq.s32.totalorder %s17, 0
      %p39 = por %p37, %p38
      %s40 = ssub.s32 %s11, %s18
      %p41 = scmp.eq.s32.totalorder %s40, 0
      %s43 = sadd.s32 %s42, 1
      %s44 = scalar_select %p41, %s42, %s43
      %p47 = pneg %p41
      %p48 = scmp.eq.s32.totalorder %s11, 1
      %p49 = por %p47, %p48
      %p50 = scmp.ne.s32.totalorder %s42, %s45
      %p51 = scmp.eq.s32.totalorder %s11, 0
      %p52 = por %p50, %p51
      %p53 = scmp.ne.s32.totalorder %s42, %s45
      %p54 = scmp.eq.s32.totalorder %s16, 1
      %p55 = por %p53, %p54
      %p56 = scmp.ne.s32.totalorder %s45, %s46
      %p57 = scmp.eq.s32.totalorder %s16, 0
      %p58 = por %p56, %p57
      %p59 = scmp.ne.s32.totalorder %s45, %s46
      %p60 = scmp.eq.s32.totalorder %s17, 1
      %p61 = por %p59, %p60
      %p63 = scmp.ne.s32.totalorder %s46, %s62
      %p64 = scmp.eq.s32.totalorder %s17, 0
      %p65 = por %p63, %p64
      %s66 = ssub.s32 %s11, %s18
      %p67 = scmp.eq.s32.totalorder %s66, 0
      %s69 = sadd.s32 %s68, 1
      %s70 = scalar_select %p67, %s68, %s69
      %p73 = pneg %p67
      %p74 = scmp.eq.s32.totalorder %s11, 1
      %p75 = por %p73, %p74
      %p76 = scmp.ne.s32.totalorder %s68, %s71
      %p77 = scmp.eq.s32.totalorder %s11, 0
      %p78 = por %p76, %p77
      %p79 = scmp.ne.s32.totalorder %s68, %s71
      %p80 = scmp.eq.s32.totalorder %s16, 1
      %p81 = por %p79, %p80
      %p82 = scmp.ne.s32.totalorder %s71, %s72
      %p83 = scmp.eq.s32.totalorder %s16, 0
      %p84 = por %p82, %p83
      %p85 = scmp.ne.s32.totalorder %s71, %s72
      %p86 = scmp.eq.s32.totalorder %s17, 1
      %p87 = por %p85, %p86
      %p89 = scmp.ne.s32.totalorder %s72, %s88
      %p90 = scmp.eq.s32.totalorder %s17, 0
      %p91 = por %p89, %p90
      %p92 = scmp.le.s32.totalorder 1, %s11
      %p93 = scmp.lt.s32.totalorder %s11, 3
      %p94 = pnand %p92, %p93
      %p95 = pneg %p94
      // Predicated region
      $region9: #{tpu_custom_call.1} parent=5 // pred_check
        _
      $region10: #{tpu_custom_call.1} parent=5 // pred_check_branch
        %97 = sbr.rel (%p94) target = $region12
      $region11: #{tpu_custom_call.1} parent=5 // pred_region
        %s98 = ssub.s32 %s11, 1
        // Predicated region
        $region13: #{tpu_custom_call.1} parent=11 // pred_check
          %p99 = pneg %p32
        $region14: #{tpu_custom_call.1} parent=11 // pred_check_branch
          %101 = sbr.rel (%p99) target = $region16
        $region15: #{tpu_custom_call.1} parent=11 // pred_region
          _
        $region16: #{tpu_custom_call.1} parent=11 // pred_fallthru
          _
      $region12: #{tpu_custom_call.1} parent=5 // pred_fallthru
        _
      %p102 = scmp.lt.s32.totalorder %s11, 2
      // Predicated region
      $region17: #{tpu_custom_call.1} parent=5 // pred_check
        %p103 = pneg %p102
      $region18: #{tpu_custom_call.1} parent=5 // pred_check_branch
        %105 = sbr.rel (%p103) target = $region20
      $region19: #{tpu_custom_call.1} parent=5 // pred_region
        // Predicated region
        $region21: #{tpu_custom_call.1} parent=19 // pred_check
          %p106 = pneg %p52
        $region22: #{tpu_custom_call.1} parent=19 // pred_check_branch
          %108 = sbr.rel (%p106) target = $region24
        $region23: #{tpu_custom_call.1} parent=19 // pred_region
          %p109 = scmp.lt.s32.totalorder %s11, 1
          %s110 = scalar_select %p109, %s11, 1
          %s111 = smul.addr %s110, 8
          %s112 = scalar_lea.vmem %s1, %s111
        $region24: #{tpu_custom_call.1} parent=19 // pred_fallthru
          _
      $region20: #{tpu_custom_call.1} parent=5 // pred_fallthru
        _
      %p113 = scmp.le.s32.totalorder 1, %s11
      %p114 = scmp.lt.s32.totalorder %s11, 3
      %p115 = pnand %p113, %p114
      %p116 = pneg %p115
      // Predicated region
      $region25: #{tpu_custom_call.1} parent=5 // pred_check
        _
      $region26: #{tpu_custom_call.1} parent=5 // pred_check_branch
        %118 = sbr.rel (%p115) target = $region28
      $region27: #{tpu_custom_call.1} parent=5 // pred_region
        %s119 = ssub.s32 %s11, 1
        %p120 = pneg %p32
        %p121 = pneg %p29
        %p122 = scmp.lt.s32.totalorder %s16, 1
        %s123 = scalar_select %p122, %s16, 1
        %s124 = smul.addr %s123, 8
        %s125 = scalar_lea.vmem %s1, %s124
        %p126 = pneg %p58
        %p127 = pneg %p55
        %p128 = pneg %p84
        %p129 = pneg %p81
        %s130 = sand.u32 %s71, 1
        %s131 = scalar_lea.sflag [#allocation3], %s130
        %s132 = sand.u32 %s71, 1
        %s133 = smul.addr %s132, 2
        %s134 = scalar_lea.vmem [#allocation2], %s133
        %p135 = scmp.lt.s32.totalorder %s16, 1
        %s136 = scalar_select %p135, %s16, 1
        %s137 = smul.addr %s136, 8
        %s138 = scalar_lea.vmem %s1, %s137
        %v139 = vlaneseq
        %v140 = vand.u32 %v139, 127
        %s141 = smul.u32 %s16, 128
        %v142 = vstv %s141
        %v143 = vadd.s32 %v140, %v142
        %v144 = vcvt.s32.f32 %v143
        %v145 = vmul.f32 %v144, 0.03125
        %v146 = vadd.f32 %v145, -0.484375
        %v147 = vmax.f32 %v146, 0.0
        %v148 = vfloor.f32 %v147
        %v149 = vmax.f32 %v148, 0.0
        %v150 = vmin.f32 %v149, 7.0
        %v151 = vsub.f32 %v147, %v150
        %v152 = vsub.f32 1.0, %v151
        %v153 = vcvt.f32.s32.to.zero.pseudo %v150
        %v154 = vadd.s32 %v153, 1
        %vm155 = vcmp.lt.s32.totalorder %v154, 7
        %v156 = vsel %vm155, %v154, 7
        %v157 = vlaneseq
        %v158 = vshrl.u32 %v157, 7
        %vm159 = vcmp.eq.s32.totalorder %v158, %v153
        %v160 = vsel %vm159, %v152, 0.0
        %vm161 = vcmp.eq.s32.totalorder %v158, %v156
        %v162 = vsel %vm161, %v151, 0.0
        %v163 = vadd.f32 %v160, %v162
        %v164 = vld [vmem:[%s0] sm:$0xff]
        %v165 = vld [vmem:[%s0 + $0x8] sm:$0xff]
        %vm166 = vcmask 64512
        %v168 = vsel %vm166, %v164, 0
        %v171 = vsel %vm166, %v165, 0
        %173 = vmatpush.msra.mxu0 0.0
        %174 = vmatpush.msra.mxu0 0.0
        %175 = vmatpush.msra.mxu0 0.0
        %176 = vmatpush.msra.mxu0 0.0
        %177 = vmatpush.msra.mxu0 0.0
        %178 = vmatpush.msra.mxu0 0.0
        %179 = vmatpush.msra.mxu0 0.0
        %180 = vmatpush.msra.mxu0 0.0
        %181 = vmatpush.msra.mxu0 0.0
        %182 = vmatpush.msra.mxu0 0.0
        %183 = vmatpush.msra.mxu0 0.0
        %184 = vmatpush.msra.mxu0 0.0
        %185 = vmatpush.msra.mxu0 0.0
        %186 = vmatpush.msra.mxu0 0.0
        %187 = vmatpush.msra.mxu0 0.0
        %188 = vmatpush.msra.mxu0 %v163
        %189 = vmatmul.f32.gmra.mxu0 %v168
        %v190 = vpop.f32.mrf.mxu0
        %v191 = vadd.f32 0.0, %v190
        %192 = vmatmul.f32.gmra.mxu0 %v171
        %v193 = vpop.f32.mrf.mxu0
        %v194 = vadd.f32 0.0, %v193
        %195 = vdwg.mxu0
        %v196 = vld [vmem:[%s138] sm:$0xff]
        %v197 = vmul.f32 %v191, %v196
        %v198 = vmul.f32 %v194, %v196
        %v199 = vrot.slane %v197, 4
        %v200 = vadd.f32 %v197, %v199
        %v201 = vrot.slane %v200, 2
        %v202 = vadd.f32 %v200, %v201
        %v203 = vrot.slane %v202, 1
        %v204 = vadd.f32 %v202, %v203
        %v205 = vrot.slane %v198, 4
        %v206 = vadd.f32 %v198, %v205
        %v207 = vrot.slane %v206, 2
        %v208 = vadd.f32 %v206, %v207
        %v209 = vrot.slane %v208, 1
        %v210 = vadd.f32 %v208, %v209
        %vm213 = vcmask 1041409
        %v214 = vsel %vm213, %v210, %v204
        %216 = vst [vmem:[%s134] sm:$0x3] %v214
        %s217 = sand.u32 %s71, 1
        %s218 = scalar_lea.sflag [#allocation3], %s217
        %s219 = sand.u32 %s71, 1
        %s220 = smul.addr %s219, 2
        %s221 = scalar_lea.vmem [#allocation2], %s220
        // Predicated region
        $region29: #{tpu_custom_call.1} parent=27 // pred_check
          %p222 = pneg %p81
        $region30: #{tpu_custom_call.1} parent=27 // pred_check_branch
          %224 = sbr.rel (%p222) target = $region32
        $region31: #{tpu_custom_call.1} parent=27 // pred_region
          %226 = vsyncadd %s218, 0
          %s227 = smul.addr %s16, 2
          %s228 = scalar_lea.hbm %s2, %s227
          %s230 = sshll.u32 %s221, 4
          %s231 = int_to_ptr.vmem [resolvable:$true] %s230
          %s232 = sshll.u32 %s228, 4
          %s233 = int_to_ptr.hbm [resolvable:$true] %s232
          %235 = dma.vmem_to_hbm [thread:$0]  %s231, 32, %s233, %s218
        $region32: #{tpu_custom_call.1} parent=27 // pred_fallthru
          _
      $region28: #{tpu_custom_call.1} parent=5 // pred_fallthru
        _
      %p236 = scmp.le.s32.totalorder 2, %s11
      // Predicated region
      $region33: #{tpu_custom_call.1} parent=5 // pred_check
        %p237 = pneg %p236
      $region34: #{tpu_custom_call.1} parent=5 // pred_check_branch
        %239 = sbr.rel (%p237) target = $region36
      $region35: #{tpu_custom_call.1} parent=5 // pred_region
        %s240 = ssub.s32 %s11, 2
        // Predicated region
        $region37: #{tpu_custom_call.1} parent=35 // pred_check
          %p241 = pneg %p87
        $region38: #{tpu_custom_call.1} parent=35 // pred_check_branch
          %243 = sbr.rel (%p241) target = $region40
        $region39: #{tpu_custom_call.1} parent=35 // pred_region
          %s244 = sand.u32 %s72, 1
          %s245 = scalar_lea.sflag [#allocation3], %s244
          %s246 = sand.u32 %s72, 1
          %s247 = smul.addr %s246, 2
          %s248 = scalar_lea.vmem [#allocation2], %s247
          %250 = dma.done %s245, 32
        $region40: #{tpu_custom_call.1} parent=35 // pred_fallthru
          _
      $region36: #{tpu_custom_call.1} parent=5 // pred_fallthru
        _
    $region6: #{tpu_custom_call.1} parent=1 // loop_footer
      %s15 = sadd.s32 1, %s11
    $region7: #{tpu_custom_call.1} parent=1 // loop_footer_branch
      %10 = sbr.rel target = $region3
    $region8: #{tpu_custom_call.1} parent=1 // loop_exit
      _
    %251 = vsyncpa [#allocation3], 1
    %s252 = scalar_lea.sflag [#allocation3], 1
    %253 = vsyncpa %s252, 1

</llo_original>
